<compile_context>
chip_gen: v7x
topology: tpu7x:2x2x1
jax: 0.10.0
libtpu: 0.0.40
codegen_flags: <defaults>
</compile_context>

<pallas_src>
import math

import jax
import jax.numpy as jnp
from jax.experimental import pallas as pl
from jax.experimental.pallas import tpu as pltpu

LANE = 128   # TPU lane width
SUB = 16     # bf16 sublane packing (16 rows per vreg)


# ----------------------------- Pallas kernel -----------------------------

def actor_kernel(x_ref,
                 w1_ref, w2_ref, w3_ref, w4_ref,
                 b123_ref,   # (3, 256) f32: rows = b1, b2, b3
                 tail_ref,   # (3, 128) f32: rows = b4_pad, scale_pad, bias_pad
                 out_ref):   # (TILE_B, 128) bf16
    bf16 = jnp.bfloat16

    # MXU: bf16 operands, f32 accumulation. Bias add / relu in f32, then drop
    # straight back to bf16 for the next matmul (keeps vreg pressure low).
    h = jnp.dot(x_ref[...], w1_ref[...], preferred_element_type=jnp.float32)
    h = jnp.maximum(h + b123_ref[0:1, :], 0.0).astype(bf16)

    h = jnp.dot(h, w2_ref[...], preferred_element_type=jnp.float32)
    h = jnp.maximum(h + b123_ref[1:2, :], 0.0).astype(bf16)

    h = jnp.dot(h, w3_ref[...], preferred_element_type=jnp.float32)
    h = jnp.maximum(h + b123_ref[2:3, :], 0.0).astype(bf16)

    logits = jnp.dot(h, w4_ref[...], preferred_element_type=jnp.float32) + tail_ref[0:1, :]
    actions = tail_ref[1:2, :] * jnp.tanh(logits) + tail_ref[2:3, :]
    out_ref[...] = actions.astype(out_ref.dtype)


# --------------------------- one-time param prep ---------------------------

def prepare_actor_params(params, action_scale, action_bias):
    """Cast / pad / coalesce parameters once, outside the per-call hot path."""
    (w1, b1), (w2, b2), (w3, b3), (w4, b4) = params
    in_dim, hidden = w1.shape
    act_dim = w4.shape[1]
    act_pad = ((act_dim + LANE - 1) // LANE) * LANE   # lane-dense final matmul/store
    pad_n = act_pad - act_dim

    return {
        "w1": w1.astype(jnp.bfloat16),
        "w2": w2.astype(jnp.bfloat16),
        "w3": w3.astype(jnp.bfloat16),
        "w4": jnp.pad(w4, ((0, 0), (0, pad_n))).astype(jnp.bfloat16),
        # Coalesced small operands: fewer DMA descriptors on a latency-bound launch.
        "b123": jnp.stack([b1, b2, b3], axis=0).astype(jnp.float32),           # (3, hidden)
        "tail": jnp.stack([jnp.pad(b4, (0, pad_n)),
                           jnp.pad(action_scale, (0, pad_n)),
                           jnp.pad(action_bias, (0, pad_n))],
                          axis=0).astype(jnp.float32),                          # (3, act_pad)
        "in_dim": in_dim, "hidden": hidden,
        "act_dim": act_dim, "act_pad": act_pad,
    }


# ------------------------------ wrapper -----------------------------------

def actor_forward(x, prepped, *, tile_b=1024):
    """x: (B, obs+goal) float32. Returns (B, action_dim) float32."""
    B, in_dim = x.shape
    hidden = prepped["hidden"]
    act_dim = prepped["act_dim"]
    act_pad = prepped["act_pad"]
    assert in_dim == prepped["in_dim"]

    # Tile selection: big tiles to amortize the ~0.35 us per-grid-step overhead,
    # fitted to B so the last tile isn't mostly padding; even grid (when >1)
    # so both v7x TensorCores get work.
    num_tiles = max(1, -(-B // tile_b))
    if num_tiles > 1 and num_tiles % 2:
        num_tiles += 1
    TILE_B = -(-B // num_tiles)
    TILE_B = ((TILE_B + SUB - 1) // SUB) * SUB
    B_pad = TILE_B * num_tiles

    xb = x.astype(jnp.bfloat16)
    if B_pad != B:
        xb = jnp.pad(xb, ((0, B_pad - B), (0, 0)))

    resident = lambda i: (0, 0)  # weights/biases stay VMEM-resident across the grid

    weight_bytes = 2 * (in_dim * hidden + 2 * hidden * hidden + hidden * act_pad) \
        + 4 * (3 * hidden + 3 * act_pad)
    cost = pl.CostEstimate(
        flops=2 * B_pad * (in_dim * hidden + 2 * hidden * hidden + hidden * act_pad),
        transcendentals=B_pad * act_pad,
        bytes_accessed=B_pad * in_dim * 2 + weight_bytes + B_pad * act_pad * 2,
    )

    out = pl.pallas_call(
        actor_kernel,
        out_shape=jax.ShapeDtypeStruct((B_pad, act_pad), jnp.bfloat16),
        grid=(num_tiles,),
        in_specs=[
            pl.BlockSpec((TILE_B, in_dim), lambda i: (i, 0)),
            pl.BlockSpec((in_dim, hidden), resident),
            pl.BlockSpec((hidden, hidden), resident),
            pl.BlockSpec((hidden, hidden), resident),
            pl.BlockSpec((hidden, act_pad), resident),
            pl.BlockSpec((3, hidden), resident),
            pl.BlockSpec((3, act_pad), resident),
        ],
        out_specs=pl.BlockSpec((TILE_B, act_pad), lambda i: (i, 0)),
        compiler_params=pltpu.CompilerParams(
            dimension_semantics=("parallel",)),
        cost_estimate=cost,
    )(xb, prepped["w1"], prepped["w2"], prepped["w3"], prepped["w4"],
      prepped["b123"], prepped["tail"])

    return out[:B, :act_dim].astype(jnp.float32)


# --------------------------- parameter setup -------------------------------

def init_linear(key, fan_in, fan_out):
    """PyTorch nn.Linear default init: U(-1/sqrt(fan_in), 1/sqrt(fan_in)).
    Weight stored transposed vs. PyTorch, i.e. (fan_in, fan_out)."""
    kw, kb = jax.random.split(key)
    bound = 1.0 / math.sqrt(fan_in)
    w = jax.random.uniform(kw, (fan_in, fan_out), jnp.float32, -bound, bound)
    b = jax.random.uniform(kb, (fan_out,), jnp.float32, -bound, bound)
    return w, b


if __name__ == "__main__":
    # Small env: obs=10, goal=3, action=4 (hidden=256 fixed by the module).
    obs_dim, goal_dim, act_dim, hidden = 10, 3, 4, 256
    in_dim = obs_dim + goal_dim
    batch = 2

    # Synthetic action space bounds (like gym Box.high / Box.low).
    high = jnp.array([1.0, 2.0, 1.0, 2.0], dtype=jnp.float32)
    low = jnp.array([-1.0, -2.0, -1.0, 0.0], dtype=jnp.float32)
    action_scale = (high - low) / 2.0
    action_bias = (high + low) / 2.0

    key = jax.random.PRNGKey(0)
    k1, k2, k3, k4, kx = jax.random.split(key, 5)
    params = (
        init_linear(k1, in_dim, hidden),
        init_linear(k2, hidden, hidden),
        init_linear(k3, hidden, hidden),
        init_linear(k4, hidden, act_dim),
    )

    # One-time parameter preparation (bf16 cast / pad / coalesce), off the hot path.
    prepped = prepare_actor_params(params, action_scale, action_bias)

    x = jax.random.normal(kx, (batch, in_dim), dtype=jnp.float32)

    actions = actor_forward(x, prepped)
    jax.block_until_ready(actions)
    assert actions.shape == (batch, act_dim)

    (w1, b1), (w2, b2), (w3, b3), (w4, b4) = params

    # Reference 1: same math as the kernel (bf16 MXU operands, f32 accum); the
    # kernel additionally rounds the final actions to bf16, hence ~1e-2 tol.
    bf = jnp.bfloat16
    h = jnp.maximum(jnp.dot(x.astype(bf), w1.astype(bf), preferred_element_type=jnp.float32) + b1, 0.0)
    h = jnp.maximum(jnp.dot(h.astype(bf), w2.astype(bf), preferred_element_type=jnp.float32) + b2, 0.0)
    h = jnp.maximum(jnp.dot(h.astype(bf), w3.astype(bf), preferred_element_type=jnp.float32) + b3, 0.0)
    ref_bf16 = action_scale * jnp.tanh(
        jnp.dot(h.astype(bf), w4.astype(bf), preferred_element_type=jnp.float32) + b4) + action_bias
    assert jnp.allclose(actions, ref_bf16, atol=2e-2, rtol=2e-2), "mismatch vs bf16 reference"

    # Reference 2: pure f32 module math -> loose sanity check on bf16 precision loss.
    h = jnp.maximum(x @ w1 + b1, 0.0)
    h = jnp.maximum(h @ w2 + b2, 0.0)
    h = jnp.maximum(h @ w3 + b3, 0.0)
    ref_f32 = action_scale * jnp.tanh(h @ w4 + b4) + action_bias
    assert jnp.allclose(actions, ref_f32, atol=1e-1, rtol=1e-1), "mismatch vs f32 reference"

    print("KERNEL_OK")
</pallas_src>

<mosaic_0001>
module attributes {stable_mosaic.version = 11 : i64} {
  func.func @actor_kernel(%arg0: i32, %arg1: memref<16x13xbf16, #tpu.memory_space<vmem>>, %arg2: memref<13x256xbf16, #tpu.memory_space<vmem>>, %arg3: memref<256x256xbf16, #tpu.memory_space<vmem>>, %arg4: memref<256x256xbf16, #tpu.memory_space<vmem>>, %arg5: memref<256x128xbf16, #tpu.memory_space<vmem>>, %arg6: memref<3x256xf32, #tpu.memory_space<vmem>>, %arg7: memref<3x128xf32, #tpu.memory_space<vmem>>, %arg8: memref<16x128xbf16, #tpu.memory_space<vmem>>) attributes {dimension_semantics = [#tpu.dimension_semantics<parallel>], iteration_bounds = array<i64: 1>, scalar_prefetch = 0 : i64, scratch_operands = 0 : i64, tpu.core_type = #tpu.core_type<tc>, window_params = [{transform_indices = @transform_0, window_bounds = array<i64: 16, 13>}, {pipeline_mode = #tpu.pipeline_mode<synchronous>, transform_indices = @transform_1, window_bounds = array<i64: 13, 256>}, {pipeline_mode = #tpu.pipeline_mode<synchronous>, transform_indices = @transform_2, window_bounds = array<i64: 256, 256>}, {pipeline_mode = #tpu.pipeline_mode<synchronous>, transform_indices = @transform_3, window_bounds = array<i64: 256, 256>}, {pipeline_mode = #tpu.pipeline_mode<synchronous>, transform_indices = @transform_4, window_bounds = array<i64: 256, 128>}, {pipeline_mode = #tpu.pipeline_mode<synchronous>, transform_indices = @transform_5, window_bounds = array<i64: 3, 256>}, {pipeline_mode = #tpu.pipeline_mode<synchronous>, transform_indices = @transform_6, window_bounds = array<i64: 3, 128>}, {transform_indices = @transform_7, window_bounds = array<i64: 16, 128>}]} {
    %c0 = arith.constant 0 : index
    %c0_0 = arith.constant 0 : index
    %0 = vector.load %arg1[%c0, %c0_0] : memref<16x13xbf16, #tpu.memory_space<vmem>>, vector<16x13xbf16>
    %c0_1 = arith.constant 0 : index
    %c0_2 = arith.constant 0 : index
    %1 = vector.load %arg2[%c0_1, %c0_2] : memref<13x256xbf16, #tpu.memory_space<vmem>>, vector<13x256xbf16>
    %cst = arith.constant dense<0.000000e+00> : vector<16x256xf32>
    %2 = tpu.matmul %0, %1, %cst {dimension_numbers = #tpu.dot_dimension_numbers<[1], [0], [0], [1], [0, 0, 1, 1], [], []>} : vector<16x13xbf16>, vector<13x256xbf16>, vector<16x256xf32> -> vector<16x256xf32>
    %c0_3 = arith.constant 0 : index
    %c0_4 = arith.constant 0 : index
    %3 = vector.load %arg6[%c0_3, %c0_4] : memref<3x256xf32, #tpu.memory_space<vmem>>, vector<1x256xf32>
    %4 = vector.broadcast %3 : vector<1x256xf32> to vector<16x256xf32>
    %5 = arith.addf %2, %4 : vector<16x256xf32>
    %cst_5 = arith.constant 0.000000e+00 : f32
    %6 = vector.broadcast %cst_5 : f32 to vector<16x256xf32>
    %7 = arith.maximumf %5, %6 : vector<16x256xf32>
    %8 = arith.truncf %7 : vector<16x256xf32> to vector<16x256xbf16>
    %c0_6 = arith.constant 0 : index
    %c0_7 = arith.constant 0 : index
    %9 = vector.load %arg3[%c0_6, %c0_7] : memref<256x256xbf16, #tpu.memory_space<vmem>>, vector<256x256xbf16>
    %cst_8 = arith.constant dense<0.000000e+00> : vector<16x256xf32>
    %10 = tpu.matmul %8, %9, %cst_8 {dimension_numbers = #tpu.dot_dimension_numbers<[1], [0], [0], [1], [0, 0, 1, 1], [], []>} : vector<16x256xbf16>, vector<256x256xbf16>, vector<16x256xf32> -> vector<16x256xf32>
    %c1 = arith.constant 1 : index
    %c0_9 = arith.constant 0 : index
    %11 = vector.load %arg6[%c1, %c0_9] : memref<3x256xf32, #tpu.memory_space<vmem>>, vector<1x256xf32>
    %12 = vector.broadcast %11 : vector<1x256xf32> to vector<16x256xf32>
    %13 = arith.addf %10, %12 : vector<16x256xf32>
    %cst_10 = arith.constant 0.000000e+00 : f32
    %14 = vector.broadcast %cst_10 : f32 to vector<16x256xf32>
    %15 = arith.maximumf %13, %14 : vector<16x256xf32>
    %16 = arith.truncf %15 : vector<16x256xf32> to vector<16x256xbf16>
    %c0_11 = arith.constant 0 : index
    %c0_12 = arith.constant 0 : index
    %17 = vector.load %arg4[%c0_11, %c0_12] : memref<256x256xbf16, #tpu.memory_space<vmem>>, vector<256x256xbf16>
    %cst_13 = arith.constant dense<0.000000e+00> : vector<16x256xf32>
    %18 = tpu.matmul %16, %17, %cst_13 {dimension_numbers = #tpu.dot_dimension_numbers<[1], [0], [0], [1], [0, 0, 1, 1], [], []>} : vector<16x256xbf16>, vector<256x256xbf16>, vector<16x256xf32> -> vector<16x256xf32>
    %c2 = arith.constant 2 : index
    %c0_14 = arith.constant 0 : index
    %19 = vector.load %arg6[%c2, %c0_14] : memref<3x256xf32, #tpu.memory_space<vmem>>, vector<1x256xf32>
    %20 = vector.broadcast %19 : vector<1x256xf32> to vector<16x256xf32>
    %21 = arith.addf %18, %20 : vector<16x256xf32>
    %cst_15 = arith.constant 0.000000e+00 : f32
    %22 = vector.broadcast %cst_15 : f32 to vector<16x256xf32>
    %23 = arith.maximumf %21, %22 : vector<16x256xf32>
    %24 = arith.truncf %23 : vector<16x256xf32> to vector<16x256xbf16>
    %c0_16 = arith.constant 0 : index
    %c0_17 = arith.constant 0 : index
    %25 = vector.load %arg5[%c0_16, %c0_17] : memref<256x128xbf16, #tpu.memory_space<vmem>>, vector<256x128xbf16>
    %cst_18 = arith.constant dense<0.000000e+00> : vector<16x128xf32>
    %26 = tpu.matmul %24, %25, %cst_18 {dimension_numbers = #tpu.dot_dimension_numbers<[1], [0], [0], [1], [0, 0, 1, 1], [], []>} : vector<16x256xbf16>, vector<256x128xbf16>, vector<16x128xf32> -> vector<16x128xf32>
    %c0_19 = arith.constant 0 : index
    %c0_20 = arith.constant 0 : index
    %27 = vector.load %arg7[%c0_19, %c0_20] : memref<3x128xf32, #tpu.memory_space<vmem>>, vector<1x128xf32>
    %28 = vector.broadcast %27 : vector<1x128xf32> to vector<16x128xf32>
    %29 = arith.addf %26, %28 : vector<16x128xf32>
    %c1_21 = arith.constant 1 : index
    %c0_22 = arith.constant 0 : index
    %30 = vector.load %arg7[%c1_21, %c0_22] : memref<3x128xf32, #tpu.memory_space<vmem>>, vector<1x128xf32>
    %31 = math.tanh %29 : vector<16x128xf32>
    %32 = vector.broadcast %30 : vector<1x128xf32> to vector<16x128xf32>
    %33 = arith.mulf %32, %31 : vector<16x128xf32>
    %c2_23 = arith.constant 2 : index
    %c0_24 = arith.constant 0 : index
    %34 = vector.load %arg7[%c2_23, %c0_24] : memref<3x128xf32, #tpu.memory_space<vmem>>, vector<1x128xf32>
    %35 = vector.broadcast %34 : vector<1x128xf32> to vector<16x128xf32>
    %36 = arith.addf %33, %35 : vector<16x128xf32>
    %37 = arith.truncf %36 : vector<16x128xf32> to vector<16x128xbf16>
    %c0_25 = arith.constant 0 : index
    %c0_26 = arith.constant 0 : index
    %38 = vector.load %arg8[%c0_25, %c0_26] : memref<16x128xbf16, #tpu.memory_space<vmem>>, vector<16x128xbf16>
    tpu.vector_store %arg8[%c0_25, %c0_26], %37 {strides = array<i32>} : memref<16x128xbf16, #tpu.memory_space<vmem>>, vector<16x128xbf16>,
    return
  }
  func.func @transform_0(%arg0: i32) -> (i32, i32) {
    %c0_i32 = arith.constant 0 : i32
    %c0_i32_0 = arith.constant 0 : i32
    return %arg0, %c0_i32 : i32, i32
  }
  func.func @transform_1(%arg0: i32) -> (i32, i32) {
    %c0_i32 = arith.constant 0 : i32
    %c0_i32_0 = arith.constant 0 : i32
    %c0_i32_1 = arith.constant 0 : i32
    return %c0_i32, %c0_i32_0 : i32, i32
  }
  func.func @transform_2(%arg0: i32) -> (i32, i32) {
    %c0_i32 = arith.constant 0 : i32
    %c0_i32_0 = arith.constant 0 : i32
    %c0_i32_1 = arith.constant 0 : i32
    return %c0_i32, %c0_i32_0 : i32, i32
  }
  func.func @transform_3(%arg0: i32) -> (i32, i32) {
    %c0_i32 = arith.constant 0 : i32
    %c0_i32_0 = arith.constant 0 : i32
    %c0_i32_1 = arith.constant 0 : i32
    return %c0_i32, %c0_i32_0 : i32, i32
  }
  func.func @transform_4(%arg0: i32) -> (i32, i32) {
    %c0_i32 = arith.constant 0 : i32
    %c0_i32_0 = arith.constant 0 : i32
    %c0_i32_1 = arith.constant 0 : i32
    return %c0_i32, %c0_i32_0 : i32, i32
  }
  func.func @transform_5(%arg0: i32) -> (i32, i32) {
    %c0_i32 = arith.constant 0 : i32
    %c0_i32_0 = arith.constant 0 : i32
    %c0_i32_1 = arith.constant 0 : i32
    return %c0_i32, %c0_i32_0 : i32, i32
  }
  func.func @transform_6(%arg0: i32) -> (i32, i32) {
    %c0_i32 = arith.constant 0 : i32
    %c0_i32_0 = arith.constant 0 : i32
    %c0_i32_1 = arith.constant 0 : i32
    return %c0_i32, %c0_i32_0 : i32, i32
  }
  func.func @transform_7(%arg0: i32) -> (i32, i32) {
    %c0_i32 = arith.constant 0 : i32
    %c0_i32_0 = arith.constant 0 : i32
    return %arg0, %c0_i32 : i32, i32
  }
}

</mosaic_0001>

<llo_original>
// kernel: tpu_custom_call.1
$region0: #{tpu_custom_call.1}
  #allocation0 [shape = 'u32[]', space=smem, size = 0x4, offset = 0x4, fixed_abs, tag = 'smem constant byte address 0x4 - core index']
  #allocation1 [shape = 'u32[144,128]{1,0:T(1,128)}', space=vmem, size = 0x12000, scoped, tag = 'internal scratch']
  %s0 = inlined_call_operand.hbm [shape: bf16[16,13], index: 0, kind: input, shape index: {}]
  %s1 = inlined_call_operand.hbm [shape: bf16[13,256], index: 1, kind: input, shape index: {}]
  %s2 = inlined_call_operand.hbm [shape: bf16[256,256], index: 2, kind: input, shape index: {}]
  %s3 = inlined_call_operand.hbm [shape: bf16[256,256], index: 3, kind: input, shape index: {}]
  %s4 = inlined_call_operand.hbm [shape: bf16[256,128], index: 4, kind: input, shape index: {}]
  %s5 = inlined_call_operand.vmem [shape: f32[3,256], index: 5, kind: input, shape index: {}]
  %s6 = inlined_call_operand.vmem [shape: f32[3,128], index: 6, kind: input, shape index: {}]
  %s7 = inlined_call_operand.hbm [shape: bf16[16,128], index: 7, kind: output, shape index: {}]
  %s8 = sld [smem:[#allocation0]]
  $region58: #{tpu_custom_call.1} parent=0
    _
  %s10 = ssub.s32 1, %s8
  %s11 = scalar_select 0, %s10, %s8
  $region1: #{tpu_custom_call.1} parent=0
    #allocation2 [shape = 'u8[4096]{0}', space=vmem, size = 0x1000, scoped, tag = 'input window, operand 0, single buffered']
    #allocation3 [shape = 's32[1]{0}', space=sflag, size = 0x4, scoped, tag = 'scoped memory for tpu_custom_call.1']
    #allocation4 [shape = 's32[1]{0}', space=sflag, size = 0x4, scoped, tag = 'scoped memory for tpu_custom_call.1']
    #allocation5 [shape = 'u8[8192]{0}', space=vmem, size = 0x2000, scoped, tag = 'input window, operand 1, single buffered']
    #allocation6 [shape = 's32[1]{0}', space=sflag, size = 0x4, scoped, tag = 'scoped memory for tpu_custom_call.1']
    #allocation7 [shape = 'u8[131072]{0}', space=vmem, size = 0x20000, scoped, tag = 'input window, operand 2, single buffered']
    #allocation8 [shape = 'u8[131072]{0}', space=vmem, size = 0x20000, scoped, tag = 'input window, operand 3, single buffered']
    #allocation9 [shape = 's32[1]{0}', space=sflag, size = 0x4, scoped, tag = 'scoped memory for tpu_custom_call.1']
    #allocation10 [shape = 'u8[65536]{0}', space=vmem, size = 0x10000, scoped, tag = 'input window, operand 4, single buffered']
    #allocation11 [shape = 'u8[4096]{0}', space=vmem, size = 0x1000, scoped, tag = 'output window, operand 0, single buffered']
    %12 = vsyncpa [#allocation3], 0
    %13 = vsyncpa [#allocation6], 0
    %14 = vsyncpa [#allocation9], 0
    %15 = vsyncpa [#allocation4], 0
    // Predicated region
    $region2: #{tpu_custom_call.1} parent=1 // pred_check
      _
    $region3: #{tpu_custom_call.1} parent=1 // pred_check_branch
      %17 = sbr.rel (0) target = $region5
    $region4: #{tpu_custom_call.1} parent=1 // pred_region
      %s19 = ssub.s32 128, 128
      %20 = vsyncadd [#allocation3], %s19
      %s21 = sshll.u32 [#allocation2], 4
      %s22 = int_to_ptr.vmem [resolvable:$true] %s21
      %27 = dma.hbm_to_vmem [thread:$0]  %s0, 128, %s22, [#allocation3], 64, 64, 4
    $region5: #{tpu_custom_call.1} parent=1 // pred_fallthru
      _
    // Predicated region
    $region6: #{tpu_custom_call.1} parent=1 // pred_check
      _
    $region7: #{tpu_custom_call.1} parent=1 // pred_check_branch
      %29 = sbr.rel (0) target = $region9
    $region8: #{tpu_custom_call.1} parent=1 // pred_region
      %s31 = ssub.s32 256, 256
      %32 = vsyncadd [#allocation6], %s31
      %s33 = sshll.u32 [#allocation5], 4
      %s34 = int_to_ptr.vmem [resolvable:$true] %s33
      %39 = dma.hbm_to_vmem [thread:$0]  %s1, 256, %s34, [#allocation6], 128, 128, 8
    $region9: #{tpu_custom_call.1} parent=1 // pred_fallthru
      _
    // Predicated region
    $region10: #{tpu_custom_call.1} parent=1 // pred_check
      _
    $region11: #{tpu_custom_call.1} parent=1 // pred_check_branch
      %41 = sbr.rel (0) target = $region13
    $region12: #{tpu_custom_call.1} parent=1 // pred_region
      %s43 = ssub.s32 4096, 4096
      %44 = vsyncadd [#allocation6], %s43
      %s45 = sshll.u32 [#allocation7], 4
      %s46 = int_to_ptr.vmem [resolvable:$true] %s45
      %51 = dma.hbm_to_vmem [thread:$0]  %s2, 4096, %s46, [#allocation6], 128, 128, 8
    $region13: #{tpu_custom_call.1} parent=1 // pred_fallthru
      _
    // Predicated region
    $region14: #{tpu_custom_call.1} parent=1 // pred_check
      _
    $region15: #{tpu_custom_call.1} parent=1 // pred_check_branch
      %53 = sbr.rel (0) target = $region17
    $region16: #{tpu_custom_call.1} parent=1 // pred_region
      %s55 = ssub.s32 4096, 4096
      %56 = vsyncadd [#allocation9], %s55
      %s57 = sshll.u32 [#allocation8], 4
      %s58 = int_to_ptr.vmem [resolvable:$true] %s57
      %63 = dma.hbm_to_vmem [thread:$0]  %s3, 4096, %s58, [#allocation9], 128, 128, 8
    $region17: #{tpu_custom_call.1} parent=1 // pred_fallthru
      _
    // Predicated region
    $region18: #{tpu_custom_call.1} parent=1 // pred_check
      _
    $region19: #{tpu_custom_call.1} parent=1 // pred_check_branch
      %65 = sbr.rel (0) target = $region21
    $region20: #{tpu_custom_call.1} parent=1 // pred_region
      %s67 = ssub.s32 2048, 2048
      %68 = vsyncadd [#allocation9], %s67
      %s69 = sshll.u32 [#allocation10], 4
      %s70 = int_to_ptr.vmem [resolvable:$true] %s69
      %75 = dma.hbm_to_vmem [thread:$0]  %s4, 2048, %s70, [#allocation9], 64, 64, 4
    $region21: #{tpu_custom_call.1} parent=1 // pred_fallthru
      _
    // Predicated region
    $region22: #{tpu_custom_call.1} parent=1 // pred_check
      _
    $region23: #{tpu_custom_call.1} parent=1 // pred_check_branch
      %77 = sbr.rel (0) target = $region25
    $region24: #{tpu_custom_call.1} parent=1 // pred_region
      _
    $region25: #{tpu_custom_call.1} parent=1 // pred_fallthru
      _
    // Predicated region
    $region26: #{tpu_custom_call.1} parent=1 // pred_check
      _
    $region27: #{tpu_custom_call.1} parent=1 // pred_check_branch
      %79 = sbr.rel (0) target = $region29
    $region28: #{tpu_custom_call.1} parent=1 // pred_region
      _
    $region29: #{tpu_custom_call.1} parent=1 // pred_fallthru
      _
    // Predicated region
    $region30: #{tpu_custom_call.1} parent=1 // pred_check
      _
    $region31: #{tpu_custom_call.1} parent=1 // pred_check_branch
      %81 = sbr.rel (0) target = $region33
    $region32: #{tpu_custom_call.1} parent=1 // pred_region
      %82 = dma.done [#allocation3], 128
    $region33: #{tpu_custom_call.1} parent=1 // pred_fallthru
      _
    // Predicated region
    $region34: #{tpu_custom_call.1} parent=1 // pred_check
      _
    $region35: #{tpu_custom_call.1} parent=1 // pred_check_branch
      %84 = sbr.rel (0) target = $region37
    $region36: #{tpu_custom_call.1} parent=1 // pred_region
      %85 = dma.done [#allocation6], 256
    $region37: #{tpu_custom_call.1} parent=1 // pred_fallthru
      _
    // Predicated region
    $region38: #{tpu_custom_call.1} parent=1 // pred_check
      _
    $region39: #{tpu_custom_call.1} parent=1 // pred_check_branch
      %87 = sbr.rel (0) target = $region41
    $region40: #{tpu_custom_call.1} parent=1 // pred_region
      %88 = dma.done [#allocation6], 4096
    $region41: #{tpu_custom_call.1} parent=1 // pred_fallthru
      _
    // Predicated region
    $region42: #{tpu_custom_call.1} parent=1 // pred_check
      _
    $region43: #{tpu_custom_call.1} parent=1 // pred_check_branch
      %90 = sbr.rel (0) target = $region45
    $region44: #{tpu_custom_call.1} parent=1 // pred_region
      %91 = dma.done [#allocation9], 4096
    $region45: #{tpu_custom_call.1} parent=1 // pred_fallthru
      _
    // Predicated region
    $region46: #{tpu_custom_call.1} parent=1 // pred_check
      _
    $region47: #{tpu_custom_call.1} parent=1 // pred_check_branch
      %93 = sbr.rel (0) target = $region49
    $region48: #{tpu_custom_call.1} parent=1 // pred_region
      %94 = dma.done [#allocation9], 2048
    $region49: #{tpu_custom_call.1} parent=1 // pred_fallthru
      _
    %v96 = vld [vmem:[#allocation2] sm:$0xf]
    %v97 = vld [vmem:[#allocation2 + $0x4] sm:$0xf]
    %v98 = vld [vmem:[#allocation5] sm:$0xff]
    %v99 = vld [vmem:[#allocation5 + $0x8] sm:$0x77]
    %v100 = vld [vmem:[%s5] ss:$4 sm:$0x3]
    %v102 = vlaneseq
    %v103 = vshrl.u32 %v102, 7
    %v104 = vsub.s32 0, %v103
    %v105 = vrot.slane %v100, %v104
    %v106 = vlaneseq
    %v107 = vshrl.u32 %v106, 7
    %v108 = vsub.s32 1, %v107
    %v109 = vrot.slane %v100, %v108
    %v114 = vunpack.c.l.b16 %v96
    %v115 = vunpack.c.l.b16 %v97
    %v116 = vpack.c.b16 %v115, %v114
    %v119 = vunpack.c.l.b16 %v98
    %v120 = vunpack.c.h.b16 %v98
    %v121 = vunpack.c.l.b16 %v99
    %v122 = vunpack.c.h.b16 %v99
    %v123 = vpack.c.b16 %v121, %v119
    %v124 = vpack.c.b16 %v122, %v120
    %vm125 = vcmask 105472
    %v127 = vsel %vm125, %v116, 0
    %vm129 = vcmask 1045504
    %vm130 = vcmask 1046528
    %v131 = vsel %vm129, 4294967295, 65535
    %v132 = vsel %vm130, %v131, 0
    %v134 = vand.u32 %v123, %v132
    %v137 = vand.u32 %v124, %v132
    %139 = vmatprep.subr.bf16.mxu0 %v137
    %140 = vmatpush1.bf16.msra.mxu0 %v134
    %141 = vmatprep.subr.bf16.mxu0 0
    %142 = vmatpush1.bf16.msra.mxu0 0
    %143 = vmatprep.subr.bf16.mxu0 0
    %144 = vmatpush1.bf16.msra.mxu0 0
    %145 = vmatprep.subr.bf16.mxu0 0
    %146 = vmatpush1.bf16.msra.mxu0 0
    %147 = vmatprep.subr.bf16.mxu0 0
    %148 = vmatpush1.bf16.msra.mxu0 0
    %149 = vmatprep.subr.bf16.mxu0 0
    %150 = vmatpush1.bf16.msra.mxu0 0
    %151 = vmatprep.subr.bf16.mxu0 0
    %152 = vmatpush1.bf16.msra.mxu0 0
    %153 = vmatprep.subr.bf16.mxu0 0
    %154 = vmatpush1.bf16.msra.mxu0 0
    %155 = vmatprep.subr.bf16.mxu0 0
    %156 = vmatpush1.bf16.msra.mxu0 0
    %157 = vmatprep.subr.bf16.mxu0 0
    %158 = vmatpush1.bf16.msra.mxu0 0
    %159 = vmatprep.subr.bf16.mxu0 0
    %160 = vmatpush1.bf16.msra.mxu0 0
    %161 = vmatprep.subr.bf16.mxu0 0
    %162 = vmatpush1.bf16.msra.mxu0 0
    %163 = vmatprep.subr.bf16.mxu0 0
    %164 = vmatpush1.bf16.msra.mxu0 0
    %165 = vmatprep.subr.bf16.mxu0 0
    %166 = vmatpush1.bf16.msra.mxu0 0
    %167 = vmatprep.subr.bf16.mxu0 0
    %168 = vmatpush1.bf16.msra.mxu0 0
    %169 = vmatprep.subr.bf16.mxu0 0
    %170 = vmatpush1.bf16.msra.mxu0 0
    %171 = vmatprep.mubr.bf16.mxu0 0
    %172 = vmatmul.mubr.bf16.gmra.mrb[0].mxu0 %v127
    %v173 = vpop.f32.mrb[0].mxu0
    %v174 = vadd.f32 %v105, %v173
    %v175 = vpop.f32.mrb[0].mxu0
    %v176 = vadd.f32 %v109, %v175
    %v177 = vpop.f32.mrb[0].mxu0
    %v178 = vadd.f32 %v105, %v177
    %v179 = vpop.f32.mrb[0].mxu0
    %v180 = vadd.f32 %v109, %v179
    %181 = vdwg.mxu0
    %v182 = vmax.f32 %v174, 0.0
    %v183 = vmax.f32 %v176, 0.0
    %v184 = vmax.f32 %v178, 0.0
    %v185 = vmax.f32 %v180, 0.0
    %v186 = vpack.c.bf16 %v184, %v182
    %v187 = vpack.c.bf16 %v185, %v183
    %v188 = vld [vmem:[#allocation7] sm:$0xff]
    %v189 = vld [vmem:[#allocation7 + $0x8] sm:$0xff]
    %v190 = vld [vmem:[#allocation7 + $0x10] sm:$0xff]
    %v191 = vld [vmem:[#allocation7 + $0x18] sm:$0xff]
    %v192 = vld [vmem:[#allocation7 + $0x20] sm:$0xff]
    %v193 = vld [vmem:[#allocation7 + $0x28] sm:$0xff]
    %v194 = vld [vmem:[#allocation7 + $0x30] sm:$0xff]
    %v195 = vld [vmem:[#allocation7 + $0x38] sm:$0xff]
    %v196 = vld [vmem:[#allocation7 + $0x40] sm:$0xff]
    %v197 = vld [vmem:[#allocation7 + $0x48] sm:$0xff]
    %v198 = vld [vmem:[#allocation7 + $0x50] sm:$0xff]
    %v199 = vld [vmem:[#allocation7 + $0x58] sm:$0xff]
    %v200 = vld [vmem:[#allocation7 + $0x60] sm:$0xff]
    %v201 = vld [vmem:[#allocation7 + $0x68] sm:$0xff]
    %v202 = vld [vmem:[#allocation7 + $0x70] sm:$0xff]
    %v203 = vld [vmem:[#allocation7 + $0x78] sm:$0xff]
    %v204 = vld [vmem:[#allocation7 + $0x80] sm:$0xff]
    %v205 = vld [vmem:[#allocation7 + $0x88] sm:$0xff]
    %v206 = vld [vmem:[#allocation7 + $0x90] sm:$0xff]
    %v207 = vld [vmem:[#allocation7 + $0x98] sm:$0xff]
    %v208 = vld [vmem:[#allocation7 + $0xa0] sm:$0xff]
    %v209 = vld [vmem:[#allocation7 + $0xa8] sm:$0xff]
    %v210 = vld [vmem:[#allocation7 + $0xb0] sm:$0xff]
    %v211 = vld [vmem:[#allocation7 + $0xb8] sm:$0xff]
    %v212 = vld [vmem:[#allocation7 + $0xc0] sm:$0xff]
    %v213 = vld [vmem:[#allocation7 + $0xc8] sm:$0xff]
    %v214 = vld [vmem:[#allocation7 + $0xd0] sm:$0xff]
    %v215 = vld [vmem:[#allocation7 + $0xd8] sm:$0xff]
    %v216 = vld [vmem:[#allocation7 + $0xe0] sm:$0xff]
    %v217 = vld [vmem:[#allocation7 + $0xe8] sm:$0xff]
    %v218 = vld [vmem:[#allocation7 + $0xf0] sm:$0xff]
    %v219 = vld [vmem:[#allocation7 + $0xf8] sm:$0xff]
    %s220 = scalar_lea.vmem %s5, 1
    %v221 = vld [vmem:[%s220] ss:$4 sm:$0x3]
    %v223 = vlaneseq
    %v224 = vshrl.u32 %v223, 7
    %v225 = vsub.s32 0, %v224
    %v226 = vrot.slane %v221, %v225
    %v227 = vlaneseq
    %v228 = vshrl.u32 %v227, 7
    %v229 = vsub.s32 1, %v228
    %v230 = vrot.slane %v221, %v229
    %v265 = vunpack.c.l.b16 %v188
    %v266 = vunpack.c.h.b16 %v188
    %v267 = vunpack.c.l.b16 %v189
    %v268 = vunpack.c.h.b16 %v189
    %v269 = vunpack.c.l.b16 %v190
    %v270 = vunpack.c.h.b16 %v190
    %v271 = vunpack.c.l.b16 %v191
    %v272 = vunpack.c.h.b16 %v191
    %v273 = vunpack.c.l.b16 %v192
    %v274 = vunpack.c.h.b16 %v192
    %v275 = vunpack.c.l.b16 %v193
    %v276 = vunpack.c.h.b16 %v193
    %v277 = vunpack.c.l.b16 %v194
    %v278 = vunpack.c.h.b16 %v194
    %v279 = vunpack.c.l.b16 %v195
    %v280 = vunpack.c.h.b16 %v195
    %v281 = vunpack.c.l.b16 %v196
    %v282 = vunpack.c.h.b16 %v196
    %v283 = vunpack.c.l.b16 %v197
    %v284 = vunpack.c.h.b16 %v197
    %v285 = vunpack.c.l.b16 %v198
    %v286 = vunpack.c.h.b16 %v198
    %v287 = vunpack.c.l.b16 %v199
    %v288 = vunpack.c.h.b16 %v199
    %v289 = vunpack.c.l.b16 %v200
    %v290 = vunpack.c.h.b16 %v200
    %v291 = vunpack.c.l.b16 %v201
    %v292 = vunpack.c.h.b16 %v201
    %v293 = vunpack.c.l.b16 %v202
    %v294 = vunpack.c.h.b16 %v202
    %v295 = vunpack.c.l.b16 %v203
    %v296 = vunpack.c.h.b16 %v203
    %v297 = vunpack.c.l.b16 %v204
    %v298 = vunpack.c.h.b16 %v204
    %v299 = vunpack.c.l.b16 %v205
    %v300 = vunpack.c.h.b16 %v205
    %v301 = vunpack.c.l.b16 %v206
    %v302 = vunpack.c.h.b16 %v206
    %v303 = vunpack.c.l.b16 %v207
    %v304 = vunpack.c.h.b16 %v207
    %v305 = vunpack.c.l.b16 %v208
    %v306 = vunpack.c.h.b16 %v208
    %v307 = vunpack.c.l.b16 %v209
    %v308 = vunpack.c.h.b16 %v209
    %v309 = vunpack.c.l.b16 %v210
    %v310 = vunpack.c.h.b16 %v210
    %v311 = vunpack.c.l.b16 %v211
    %v312 = vunpack.c.h.b16 %v211
    %v313 = vunpack.c.l.b16 %v212
    %v314 = vunpack.c.h.b16 %v212
    %v315 = vunpack.c.l.b16 %v213
    %v316 = vunpack.c.h.b16 %v213
    %v317 = vunpack.c.l.b16 %v214
    %v318 = vunpack.c.h.b16 %v214
    %v319 = vunpack.c.l.b16 %v215
    %v320 = vunpack.c.h.b16 %v215
    %v321 = vunpack.c.l.b16 %v216
    %v322 = vunpack.c.h.b16 %v216
    %v323 = vunpack.c.l.b16 %v217
    %v324 = vunpack.c.h.b16 %v217
    %v325 = vunpack.c.l.b16 %v218
    %v326 = vunpack.c.h.b16 %v218
    %v327 = vunpack.c.l.b16 %v219
    %v328 = vunpack.c.h.b16 %v219
    %v329 = vpack.c.b16 %v267, %v265
    %v330 = vpack.c.b16 %v268, %v266
    %v331 = vpack.c.b16 %v271, %v269
    %v332 = vpack.c.b16 %v272, %v270
    %v333 = vpack.c.b16 %v275, %v273
    %v334 = vpack.c.b16 %v276, %v274
    %v335 = vpack.c.b16 %v279, %v277
    %v336 = vpack.c.b16 %v280, %v278
    %v337 = vpack.c.b16 %v283, %v281
    %v338 = vpack.c.b16 %v284, %v282
    %v339 = vpack.c.b16 %v287, %v285
    %v340 = vpack.c.b16 %v288, %v286
    %v341 = vpack.c.b16 %v291, %v289
    %v342 = vpack.c.b16 %v292, %v290
    %v343 = vpack.c.b16 %v295, %v293
    %v344 = vpack.c.b16 %v296, %v294
    %v345 = vpack.c.b16 %v299, %v297
    %v346 = vpack.c.b16 %v300, %v298
    %v347 = vpack.c.b16 %v303, %v301
    %v348 = vpack.c.b16 %v304, %v302
    %v349 = vpack.c.b16 %v307, %v305
    %v350 = vpack.c.b16 %v308, %v306
    %v351 = vpack.c.b16 %v311, %v309
    %v352 = vpack.c.b16 %v312, %v310
    %v353 = vpack.c.b16 %v315, %v313
    %v354 = vpack.c.b16 %v316, %v314
    %v355 = vpack.c.b16 %v319, %v317
    %v356 = vpack.c.b16 %v320, %v318
    %v357 = vpack.c.b16 %v323, %v321
    %v358 = vpack.c.b16 %v324, %v322
    %v359 = vpack.c.b16 %v327, %v325
    %v360 = vpack.c.b16 %v328, %v326
    %393 = vmatprep.subr.bf16.mxu0 %v330
    %394 = vmatpush1.bf16.msra.mxu0 %v329
    %395 = vmatprep.subr.bf16.mxu0 %v332
    %396 = vmatpush1.bf16.msra.mxu0 %v331
    %397 = vmatprep.subr.bf16.mxu0 %v334
    %398 = vmatpush1.bf16.msra.mxu0 %v333
    %399 = vmatprep.subr.bf16.mxu0 %v336
    %400 = vmatpush1.bf16.msra.mxu0 %v335
    %401 = vmatprep.subr.bf16.mxu0 %v338
    %402 = vmatpush1.bf16.msra.mxu0 %v337
    %403 = vmatprep.subr.bf16.mxu0 %v340
    %404 = vmatpush1.bf16.msra.mxu0 %v339
    %405 = vmatprep.subr.bf16.mxu0 %v342
    %406 = vmatpush1.bf16.msra.mxu0 %v341
    %407 = vmatprep.subr.bf16.mxu0 %v344
    %408 = vmatpush1.bf16.msra.mxu0 %v343
    %409 = vmatprep.subr.bf16.mxu0 %v346
    %410 = vmatpush1.bf16.msra.mxu0 %v345
    %411 = vmatprep.subr.bf16.mxu0 %v348
    %412 = vmatpush1.bf16.msra.mxu0 %v347
    %413 = vmatprep.subr.bf16.mxu0 %v350
    %414 = vmatpush1.bf16.msra.mxu0 %v349
    %415 = vmatprep.subr.bf16.mxu0 %v352
    %416 = vmatpush1.bf16.msra.mxu0 %v351
    %417 = vmatprep.subr.bf16.mxu0 %v354
    %418 = vmatpush1.bf16.msra.mxu0 %v353
    %419 = vmatprep.subr.bf16.mxu0 %v356
    %420 = vmatpush1.bf16.msra.mxu0 %v355
    %421 = vmatprep.subr.bf16.mxu0 %v358
    %422 = vmatpush1.bf16.msra.mxu0 %v357
    %423 = vmatprep.subr.bf16.mxu0 %v360
    %424 = vmatpush1.bf16.msra.mxu0 %v359
    %425 = vmatprep.mubr.bf16.mxu0 %v187
    %426 = vmatmul.mubr.bf16.gmra.mrb[0].mxu0 %v186
    %v427 = vpop.f32.mrb[0].mxu0
    %v428 = vadd.f32 %v226, %v427
    %v429 = vpop.f32.mrb[0].mxu0
    %v430 = vadd.f32 %v230, %v429
    %v431 = vpop.f32.mrb[0].mxu0
    %v432 = vadd.f32 %v226, %v431
    %v433 = vpop.f32.mrb[0].mxu0
    %v434 = vadd.f32 %v230, %v433
    %435 = vdwg.mxu0
    %v436 = vmax.f32 %v428, 0.0
    %v437 = vmax.f32 %v430, 0.0
    %v438 = vmax.f32 %v432, 0.0
    %v439 = vmax.f32 %v434, 0.0
    %v440 = vpack.c.bf16 %v438, %v436
    %v441 = vpack.c.bf16 %v439, %v437
    %v442 = vld [vmem:[#allocation8] sm:$0xff]
    %v443 = vld [vmem:[#allocation8 + $0x8] sm:$0xff]
    %v444 = vld [vmem:[#allocation8 + $0x10] sm:$0xff]
    %v445 = vld [vmem:[#allocation8 + $0x18] sm:$0xff]
    %v446 = vld [vmem:[#allocation8 + $0x20] sm:$0xff]
    %v447 = vld [vmem:[#allocation8 + $0x28] sm:$0xff]
    %v448 = vld [vmem:[#allocation8 + $0x30] sm:$0xff]
    %v449 = vld [vmem:[#allocation8 + $0x38] sm:$0xff]
    %v450 = vld [vmem:[#allocation8 + $0x40] sm:$0xff]
    %v451 = vld [vmem:[#allocation8 + $0x48] sm:$0xff]
    %v452 = vld [vmem:[#allocation8 + $0x50] sm:$0xff]
    %v453 = vld [vmem:[#allocation8 + $0x58] sm:$0xff]
    %v454 = vld [vmem:[#allocation8 + $0x60] sm:$0xff]
    %v455 = vld [vmem:[#allocation8 + $0x68] sm:$0xff]
    %v456 = vld [vmem:[#allocation8 + $0x70] sm:$0xff]
    %v457 = vld [vmem:[#allocation8 + $0x78] sm:$0xff]
    %v458 = vld [vmem:[#allocation8 + $0x80] sm:$0xff]
    %v459 = vld [vmem:[#allocation8 + $0x88] sm:$0xff]
    %v460 = vld [vmem:[#allocation8 + $0x90] sm:$0xff]
    %v461 = vld [vmem:[#allocation8 + $0x98] sm:$0xff]
    %v462 = vld [vmem:[#allocation8 + $0xa0] sm:$0xff]
    %v463 = vld [vmem:[#allocation8 + $0xa8] sm:$0xff]
    %v464 = vld [vmem:[#allocation8 + $0xb0] sm:$0xff]
    %v465 = vld [vmem:[#allocation8 + $0xb8] sm:$0xff]
    %v466 = vld [vmem:[#allocation8 + $0xc0] sm:$0xff]
    %v467 = vld [vmem:[#allocation8 + $0xc8] sm:$0xff]
    %v468 = vld [vmem:[#allocation8 + $0xd0] sm:$0xff]
    %v469 = vld [vmem:[#allocation8 + $0xd8] sm:$0xff]
    %v470 = vld [vmem:[#allocation8 + $0xe0] sm:$0xff]
    %v471 = vld [vmem:[#allocation8 + $0xe8] sm:$0xff]
    %v472 = vld [vmem:[#allocation8 + $0xf0] sm:$0xff]
    %v473 = vld [vmem:[#allocation8 + $0xf8] sm:$0xff]
    %s474 = scalar_lea.vmem %s5, 2
    %v475 = vld [vmem:[%s474] ss:$4 sm:$0x3]
    %v477 = vlaneseq
    %v478 = vshrl.u32 %v477, 7
    %v479 = vsub.s32 0, %v478
    %v480 = vrot.slane %v475, %v479
    %v481 = vlaneseq
    %v482 = vshrl.u32 %v481, 7
    %v483 = vsub.s32 1, %v482
    %v484 = vrot.slane %v475, %v483
    %v519 = vunpack.c.l.b16 %v442
    %v520 = vunpack.c.h.b16 %v442
    %v521 = vunpack.c.l.b16 %v443
    %v522 = vunpack.c.h.b16 %v443
    %v523 = vunpack.c.l.b16 %v444
    %v524 = vunpack.c.h.b16 %v444
    %v525 = vunpack.c.l.b16 %v445
    %v526 = vunpack.c.h.b16 %v445
    %v527 = vunpack.c.l.b16 %v446
    %v528 = vunpack.c.h.b16 %v446
    %v529 = vunpack.c.l.b16 %v447
    %v530 = vunpack.c.h.b16 %v447
    %v531 = vunpack.c.l.b16 %v448
    %v532 = vunpack.c.h.b16 %v448
    %v533 = vunpack.c.l.b16 %v449
    %v534 = vunpack.c.h.b16 %v449
    %v535 = vunpack.c.l.b16 %v450
    %v536 = vunpack.c.h.b16 %v450
    %v537 = vunpack.c.l.b16 %v451
    %v538 = vunpack.c.h.b16 %v451
    %v539 = vunpack.c.l.b16 %v452
    %v540 = vunpack.c.h.b16 %v452
    %v541 = vunpack.c.l.b16 %v453
    %v542 = vunpack.c.h.b16 %v453
    %v543 = vunpack.c.l.b16 %v454
    %v544 = vunpack.c.h.b16 %v454
    %v545 = vunpack.c.l.b16 %v455
    %v546 = vunpack.c.h.b16 %v455
    %v547 = vunpack.c.l.b16 %v456
    %v548 = vunpack.c.h.b16 %v456
    %v549 = vunpack.c.l.b16 %v457
    %v550 = vunpack.c.h.b16 %v457
    %v551 = vunpack.c.l.b16 %v458
    %v552 = vunpack.c.h.b16 %v458
    %v553 = vunpack.c.l.b16 %v459
    %v554 = vunpack.c.h.b16 %v459
    %v555 = vunpack.c.l.b16 %v460
    %v556 = vunpack.c.h.b16 %v460
    %v557 = vunpack.c.l.b16 %v461
    %v558 = vunpack.c.h.b16 %v461
    %v559 = vunpack.c.l.b16 %v462
    %v560 = vunpack.c.h.b16 %v462
    %v561 = vunpack.c.l.b16 %v463
    %v562 = vunpack.c.h.b16 %v463
    %v563 = vunpack.c.l.b16 %v464
    %v564 = vunpack.c.h.b16 %v464
    %v565 = vunpack.c.l.b16 %v465
    %v566 = vunpack.c.h.b16 %v465
    %v567 = vunpack.c.l.b16 %v466
    %v568 = vunpack.c.h.b16 %v466
    %v569 = vunpack.c.l.b16 %v467
    %v570 = vunpack.c.h.b16 %v467
    %v571 = vunpack.c.l.b16 %v468
    %v572 = vunpack.c.h.b16 %v468
    %v573 = vunpack.c.l.b16 %v469
    %v574 = vunpack.c.h.b16 %v469
    %v575 = vunpack.c.l.b16 %v470
    %v576 = vunpack.c.h.b16 %v470
    %v577 = vunpack.c.l.b16 %v471
    %v578 = vunpack.c.h.b16 %v471
    %v579 = vunpack.c.l.b16 %v472
    %v580 = vunpack.c.h.b16 %v472
    %v581 = vunpack.c.l.b16 %v473
    %v582 = vunpack.c.h.b16 %v473
    %v583 = vpack.c.b16 %v521, %v519
    %v584 = vpack.c.b16 %v522, %v520
    %v585 = vpack.c.b16 %v525, %v523
    %v586 = vpack.c.b16 %v526, %v524
    %v587 = vpack.c.b16 %v529, %v527
    %v588 = vpack.c.b16 %v530, %v528
    %v589 = vpack.c.b16 %v533, %v531
    %v590 = vpack.c.b16 %v534, %v532
    %v591 = vpack.c.b16 %v537, %v535
    %v592 = vpack.c.b16 %v538, %v536
    %v593 = vpack.c.b16 %v541, %v539
    %v594 = vpack.c.b16 %v542, %v540
    %v595 = vpack.c.b16 %v545, %v543
    %v596 = vpack.c.b16 %v546, %v544
    %v597 = vpack.c.b16 %v549, %v547
    %v598 = vpack.c.b16 %v550, %v548
    %v599 = vpack.c.b16 %v553, %v551
    %v600 = vpack.c.b16 %v554, %v552
    %v601 = vpack.c.b16 %v557, %v555
    %v602 = vpack.c.b16 %v558, %v556
    %v603 = vpack.c.b16 %v561, %v559
    %v604 = vpack.c.b16 %v562, %v560
    %v605 = vpack.c.b16 %v565, %v563
    %v606 = vpack.c.b16 %v566, %v564
    %v607 = vpack.c.b16 %v569, %v567
    %v608 = vpack.c.b16 %v570, %v568
    %v609 = vpack.c.b16 %v573, %v571
    %v610 = vpack.c.b16 %v574, %v572
    %v611 = vpack.c.b16 %v577, %v575
    %v612 = vpack.c.b16 %v578, %v576
    %v613 = vpack.c.b16 %v581, %v579
    %v614 = vpack.c.b16 %v582, %v580
    %647 = vmatprep.subr.bf16.mxu0 %v584
    %648 = vmatpush1.bf16.msra.mxu0 %v583
    %649 = vmatprep.subr.bf16.mxu0 %v586
    %650 = vmatpush1.bf16.msra.mxu0 %v585
    %651 = vmatprep.subr.bf16.mxu0 %v588
    %652 = vmatpush1.bf16.msra.mxu0 %v587
    %653 = vmatprep.subr.bf16.mxu0 %v590
    %654 = vmatpush1.bf16.msra.mxu0 %v589
    %655 = vmatprep.subr.bf16.mxu0 %v592
    %656 = vmatpush1.bf16.msra.mxu0 %v591
    %657 = vmatprep.subr.bf16.mxu0 %v594
    %658 = vmatpush1.bf16.msra.mxu0 %v593
    %659 = vmatprep.subr.bf16.mxu0 %v596
    %660 = vmatpush1.bf16.msra.mxu0 %v595
    %661 = vmatprep.subr.bf16.mxu0 %v598
    %662 = vmatpush1.bf16.msra.mxu0 %v597
    %663 = vmatprep.subr.bf16.mxu0 %v600
    %664 = vmatpush1.bf16.msra.mxu0 %v599
    %665 = vmatprep.subr.bf16.mxu0 %v602
    %666 = vmatpush1.bf16.msra.mxu0 %v601
    %667 = vmatprep.subr.bf16.mxu0 %v604
    %668 = vmatpush1.bf16.msra.mxu0 %v603
    %669 = vmatprep.subr.bf16.mxu0 %v606
    %670 = vmatpush1.bf16.msra.mxu0 %v605
    %671 = vmatprep.subr.bf16.mxu0 %v608
    %672 = vmatpush1.bf16.msra.mxu0 %v607
    %673 = vmatprep.subr.bf16.mxu0 %v610
    %674 = vmatpush1.bf16.msra.mxu0 %v609
    %675 = vmatprep.subr.bf16.mxu0 %v612
    %676 = vmatpush1.bf16.msra.mxu0 %v611
    %677 = vmatprep.subr.bf16.mxu0 %v614
    %678 = vmatpush1.bf16.msra.mxu0 %v613
    %679 = vmatprep.mubr.bf16.mxu0 %v441
    %680 = vmatmul.mubr.bf16.gmra.mrb[0].mxu0 %v440
    %v681 = vpop.f32.mrb[0].mxu0
    %v682 = vadd.f32 %v480, %v681
    %v683 = vpop.f32.mrb[0].mxu0
    %v684 = vadd.f32 %v484, %v683
    %v685 = vpop.f32.mrb[0].mxu0
    %v686 = vadd.f32 %v480, %v685
    %v687 = vpop.f32.mrb[0].mxu0
    %v688 = vadd.f32 %v484, %v687
    %689 = vdwg.mxu0
    %v690 = vmax.f32 %v682, 0.0
    %v691 = vmax.f32 %v684, 0.0
    %v692 = vmax.f32 %v686, 0.0
    %v693 = vmax.f32 %v688, 0.0
    %v694 = vpack.c.bf16 %v692, %v690
    %v695 = vpack.c.bf16 %v693, %v691
    %v696 = vld [vmem:[#allocation10] sm:$0xf]
    %v697 = vld [vmem:[#allocation10 + $0x4] sm:$0xf]
    %v698 = vld [vmem:[#allocation10 + $0x8] sm:$0xf]
    %v699 = vld [vmem:[#allocation10 + $0xc] sm:$0xf]
    %v700 = vld [vmem:[#allocation10 + $0x10] sm:$0xf]
    %v701 = vld [vmem:[#allocation10 + $0x14] sm:$0xf]
    %v702 = vld [vmem:[#allocation10 + $0x18] sm:$0xf]
    %v703 = vld [vmem:[#allocation10 + $0x1c] sm:$0xf]
    %v704 = vld [vmem:[#allocation10 + $0x20] sm:$0xf]
    %v705 = vld [vmem:[#allocation10 + $0x24] sm:$0xf]
    %v706 = vld [vmem:[#allocation10 + $0x28] sm:$0xf]
    %v707 = vld [vmem:[#allocation10 + $0x2c] sm:$0xf]
    %v708 = vld [vmem:[#allocation10 + $0x30] sm:$0xf]
    %v709 = vld [vmem:[#allocation10 + $0x34] sm:$0xf]
    %v710 = vld [vmem:[#allocation10 + $0x38] sm:$0xf]
    %v711 = vld [vmem:[#allocation10 + $0x3c] sm:$0xf]
    %v712 = vld [vmem:[#allocation10 + $0x40] sm:$0xf]
    %v713 = vld [vmem:[#allocation10 + $0x44] sm:$0xf]
    %v714 = vld [vmem:[#allocation10 + $0x48] sm:$0xf]
    %v715 = vld [vmem:[#allocation10 + $0x4c] sm:$0xf]
    %v716 = vld [vmem:[#allocation10 + $0x50] sm:$0xf]
    %v717 = vld [vmem:[#allocation10 + $0x54] sm:$0xf]
    %v718 = vld [vmem:[#allocation10 + $0x58] sm:$0xf]
    %v719 = vld [vmem:[#allocation10 + $0x5c] sm:$0xf]
    %v720 = vld [vmem:[#allocation10 + $0x60] sm:$0xf]
    %v721 = vld [vmem:[#allocation10 + $0x64] sm:$0xf]
    %v722 = vld [vmem:[#allocation10 + $0x68] sm:$0xf]
    %v723 = vld [vmem:[#allocation10 + $0x6c] sm:$0xf]
    %v724 = vld [vmem:[#allocation10 + $0x70] sm:$0xf]
    %v725 = vld [vmem:[#allocation10 + $0x74] sm:$0xf]
    %v726 = vld [vmem:[#allocation10 + $0x78] sm:$0xf]
    %v727 = vld [vmem:[#allocation10 + $0x7c] sm:$0xf]
    %v728 = vld [vmem:[%s6] sm:$0x1]
    %v729 = vlaneseq
    %v730 = vshrl.u32 %v729, 7
    %v731 = vsub.s32 0, %v730
    %v732 = vrot.slane %v728, %v731
    %v765 = vunpack.c.l.b16 %v696
    %v766 = vunpack.c.l.b16 %v697
    %v767 = vunpack.c.l.b16 %v698
    %v768 = vunpack.c.l.b16 %v699
    %v769 = vunpack.c.l.b16 %v700
    %v770 = vunpack.c.l.b16 %v701
    %v771 = vunpack.c.l.b16 %v702
    %v772 = vunpack.c.l.b16 %v703
    %v773 = vunpack.c.l.b16 %v704
    %v774 = vunpack.c.l.b16 %v705
    %v775 = vunpack.c.l.b16 %v706
    %v776 = vunpack.c.l.b16 %v707
    %v777 = vunpack.c.l.b16 %v708
    %v778 = vunpack.c.l.b16 %v709
    %v779 = vunpack.c.l.b16 %v710
    %v780 = vunpack.c.l.b16 %v711
    %v781 = vunpack.c.l.b16 %v712
    %v782 = vunpack.c.l.b16 %v713
    %v783 = vunpack.c.l.b16 %v714
    %v784 = vunpack.c.l.b16 %v715
    %v785 = vunpack.c.l.b16 %v716
    %v786 = vunpack.c.l.b16 %v717
    %v787 = vunpack.c.l.b16 %v718
    %v788 = vunpack.c.l.b16 %v719
    %v789 = vunpack.c.l.b16 %v720
    %v790 = vunpack.c.l.b16 %v721
    %v791 = vunpack.c.l.b16 %v722
    %v792 = vunpack.c.l.b16 %v723
    %v793 = vunpack.c.l.b16 %v724
    %v794 = vunpack.c.l.b16 %v725
    %v795 = vunpack.c.l.b16 %v726
    %v796 = vunpack.c.l.b16 %v727
    %v797 = vpack.c.b16 %v766, %v765
    %v798 = vpack.c.b16 %v768, %v767
    %v799 = vpack.c.b16 %v770, %v769
    %v800 = vpack.c.b16 %v772, %v771
    %v801 = vpack.c.b16 %v774, %v773
    %v802 = vpack.c.b16 %v776, %v775
    %v803 = vpack.c.b16 %v778, %v777
    %v804 = vpack.c.b16 %v780, %v779
    %v805 = vpack.c.b16 %v782, %v781
    %v806 = vpack.c.b16 %v784, %v783
    %v807 = vpack.c.b16 %v786, %v785
    %v808 = vpack.c.b16 %v788, %v787
    %v809 = vpack.c.b16 %v790, %v789
    %v810 = vpack.c.b16 %v792, %v791
    %v811 = vpack.c.b16 %v794, %v793
    %v812 = vpack.c.b16 %v796, %v795
    %829 = vmatprep.subr.bf16.mxu0 0
    %830 = vmatpush1.bf16.msra.mxu0 %v797
    %831 = vmatprep.subr.bf16.mxu0 0
    %832 = vmatpush1.bf16.msra.mxu0 %v798
    %833 = vmatprep.subr.bf16.mxu0 0
    %834 = vmatpush1.bf16.msra.mxu0 %v799
    %835 = vmatprep.subr.bf16.mxu0 0
    %836 = vmatpush1.bf16.msra.mxu0 %v800
    %837 = vmatprep.subr.bf16.mxu0 0
    %838 = vmatpush1.bf16.msra.mxu0 %v801
    %839 = vmatprep.subr.bf16.mxu0 0
    %840 = vmatpush1.bf16.msra.mxu0 %v802
    %841 = vmatprep.subr.bf16.mxu0 0
    %842 = vmatpush1.bf16.msra.mxu0 %v803
    %843 = vmatprep.subr.bf16.mxu0 0
    %844 = vmatpush1.bf16.msra.mxu0 %v804
    %845 = vmatprep.subr.bf16.mxu0 0
    %846 = vmatpush1.bf16.msra.mxu0 %v805
    %847 = vmatprep.subr.bf16.mxu0 0
    %848 = vmatpush1.bf16.msra.mxu0 %v806
    %849 = vmatprep.subr.bf16.mxu0 0
    %850 = vmatpush1.bf16.msra.mxu0 %v807
    %851 = vmatprep.subr.bf16.mxu0 0
    %852 = vmatpush1.bf16.msra.mxu0 %v808
    %853 = vmatprep.subr.bf16.mxu0 0
    %854 = vmatpush1.bf16.msra.mxu0 %v809
    %855 = vmatprep.subr.bf16.mxu0 0
    %856 = vmatpush1.bf16.msra.mxu0 %v810
    %857 = vmatprep.subr.bf16.mxu0 0
    %858 = vmatpush1.bf16.msra.mxu0 %v811
    %859 = vmatprep.subr.bf16.mxu0 0
    %860 = vmatpush1.bf16.msra.mxu0 %v812
    %861 = vmatprep.mubr.bf16.mxu0 %v695
    %862 = vmatmul.mubr.bf16.gmra.mrb[0].mxu0 %v694
    %v863 = vpop.f32.mrb[0].mxu0
    %v864 = vadd.f32 %v732, %v863
    %v865 = vpop.f32.mrb[0].mxu0
    %v866 = vpop.f32.mrb[0].mxu0
    %v867 = vadd.f32 %v732, %v866
    %v868 = vpop.f32.mrb[0].mxu0
    %869 = vdwg.mxu0
    %v870 = vld [vmem:[%s6 + $0x1] sm:$0x1]
    %v871 = vtanh.pop %v864
    %v872 = vtanh.pop %v867
    %v873 = vlaneseq
    %v874 = vshrl.u32 %v873, 7
    %v875 = vsub.s32 0, %v874
    %v876 = vrot.slane %v870, %v875
    %v877 = vmul.f32 %v876, %v871
    %v878 = vmul.f32 %v876, %v872
    %v879 = vld [vmem:[%s6 + $0x2] sm:$0x1]
    %v880 = vlaneseq
    %v881 = vshrl.u32 %v880, 7
    %v882 = vsub.s32 0, %v881
    %v883 = vrot.slane %v879, %v882
    %v884 = vadd.f32 %v877, %v883
    %v885 = vadd.f32 %v878, %v883
    %v886 = vpack.c.bf16 %v885, %v884
    %v888 = vunpack.c.l.b16 %v886
    %v889 = vunpack.c.h.b16 %v886
    %v890 = vpack.c.b16 %v888, %v888
    %v891 = vpack.c.b16 %v889, %v889
    %894 = vst [vmem:[#allocation11] sm:$0xf] %v890
    %895 = vst [vmem:[#allocation11 + $0x4] sm:$0xf] %v891
    // Predicated region
    $region50: #{tpu_custom_call.1} parent=1 // pred_check
      _
    $region51: #{tpu_custom_call.1} parent=1 // pred_check_branch
      %897 = sbr.rel (0) target = $region53
    $region52: #{tpu_custom_call.1} parent=1 // pred_region
      %s899 = ssub.s32 128, 128
      %900 = vsyncadd [#allocation4], %s899
      %s901 = sshll.u32 [#allocation11], 4
      %s902 = int_to_ptr.vmem [resolvable:$true] %s901
      %907 = dma.vmem_to_hbm [thread:$0]  %s902, 128, %s7, [#allocation4], 64, 64, 4
    $region53: #{tpu_custom_call.1} parent=1 // pred_fallthru
      _
    // Predicated region
    $region54: #{tpu_custom_call.1} parent=1 // pred_check
      _
    $region55: #{tpu_custom_call.1} parent=1 // pred_check_branch
      %909 = sbr.rel (0) target = $region57
    $region56: #{tpu_custom_call.1} parent=1 // pred_region
      %910 = dma.done [#allocation4], 128
    $region57: #{tpu_custom_call.1} parent=1 // pred_fallthru
      _
    %911 = vsyncpa [#allocation3], 1
    %912 = vsyncpa [#allocation6], 1
    %913 = vsyncpa [#allocation9], 1
    %914 = vsyncpa [#allocation4], 1

</llo_original>
